<compile_context>
chip_gen: v7x
topology: tpu7x:2x2x1
jax: 0.10.0
libtpu: 0.0.40
codegen_flags: <defaults>
</compile_context>

<pallas_src>
import jax
import jax.numpy as jnp
import numpy as np
from jax.experimental import pallas as pl
from jax.experimental.pallas import tpu as pltpu

EPS = 1e-5          # nn.BatchNorm1d default eps
NEG_SLOPE = 0.01    # nn.LeakyReLU(negative_slope=0.01)
HIDDEN = 64
JAC = 12
OUT_W = 16          # packed output width: cols 0:12 = jacobian, 12:16 = bmm output

# merged bf16 parameter-slab row layout (width 64)
_ROW_B1, _ROW_G1, _ROW_BE1 = 0, 1, 2
_ROW_B2, _ROW_G2, _ROW_BE2 = 3, 4, 5
_ROW_B3 = 6                    # b3 in lanes 0:12
_W1_ROW0 = 16                  # w1  (12, 64) rows 16:28
_W2_ROW0 = 32                  # w2  (64, 64) rows 32:96
_W3_ROW0 = 96                  # w3  (64, 12) rows 96:160, lanes 0:12
_RMAT_ROW0 = 160               # rmat ( 3, 16) rows 160:163, lanes 0:16
_SMAT_ROW0 = 176               # smat (16, 16) rows 176:192, lanes 0:16
SLAB_ROWS = 192


def finetune_kernel(x_ref, v_ref, slab_ref, out_ref):
    """3 bf16 MXU matmuls + 2 training-mode BatchNorms + LeakyReLU + fused bmm.

    x_ref    : (B, 12)   f32   flat jacobian from the base model
    v_ref    : (B, 3)    f32   tcp velocity
    slab_ref : (192, 64) bf16  packed params + structural constants
    out_ref  : (B, 16)   f32   cols 0:12 = new_jacobian (flat), cols 12:16 = bmm output
    """
    x = x_ref[...]                                           # (B, 12) f32
    v = v_ref[...]                                           # (B, 3)  f32
    B = x.shape[0]

    # parameter vectors (one aligned load, upcast once)
    vecs = slab_ref[0:8, :].astype(jnp.float32)              # (8, 64)
    b1, g1, be1 = vecs[0:1, :], vecs[1:2, :], vecs[2:3, :]
    b2, g2, be2 = vecs[3:4, :], vecs[4:5, :], vecs[5:6, :]
    b3e = vecs[_ROW_B3:_ROW_B3 + 1, 0:OUT_W]                 # (1, 16) cols 12:16 zero

    # bf16 weight tiles / structural constants straight from the slab
    w1 = slab_ref[_W1_ROW0:_W1_ROW0 + JAC, :]                # (12, 64)
    w2 = slab_ref[_W2_ROW0:_W2_ROW0 + HIDDEN, :]             # (64, 64)
    w3e = slab_ref[_W3_ROW0:_W3_ROW0 + HIDDEN, 0:OUT_W]      # (64, 16) cols 12:16 zero
    rmat = slab_ref[_RMAT_ROW0:_RMAT_ROW0 + 3, 0:OUT_W]      # ( 3, 16) v replication
    smat = slab_ref[_SMAT_ROW0:_SMAT_ROW0 + OUT_W, 0:OUT_W]  # (16, 16) triplet group-sum

    ones_b = jnp.ones((1, B), jnp.bfloat16)
    inv_b = 1.0 / B

    def bn_lrelu(h, g, be):
        # BatchNorm1d, training mode (batch mean, biased batch var, eps=1e-5).
        # sum / sum-of-squares via the (idle) MXU so the two reductions are
        # independent; var = E[h^2] - mu^2.  Dropout(p=0) is the identity.
        hb = h.astype(jnp.bfloat16)
        hhb = (h * h).astype(jnp.bfloat16)
        s = jnp.dot(ones_b, hb, preferred_element_type=jnp.float32)    # (1, 64)
        ss = jnp.dot(ones_b, hhb, preferred_element_type=jnp.float32)  # (1, 64)
        mu = s * inv_b
        var = jnp.maximum(ss * inv_b - mu * mu, 0.0)
        hn = (h - mu) * jax.lax.rsqrt(var + EPS) * g + be
        # LeakyReLU(0.01): identical to where(h>=0, h, 0.01h) for slope < 1.
        return jnp.maximum(hn, NEG_SLOPE * hn)

    # layer 1: Linear(12, 64) + BN + LeakyReLU
    h = jnp.dot(x.astype(jnp.bfloat16), w1, preferred_element_type=jnp.float32) + b1
    h = bn_lrelu(h, g1, be1)
    # layer 2: Linear(64, 64) + BN + LeakyReLU
    h = jnp.dot(h.astype(jnp.bfloat16), w2, preferred_element_type=jnp.float32) + b2
    h = bn_lrelu(h, g2, be2)

    # final Linear(64, 12), emitted into the packed 16-wide slab (cols 12:16 = 0)
    y16 = jnp.dot(h.astype(jnp.bfloat16), w3e, preferred_element_type=jnp.float32) + b3e

    # Fused bmm:  output[b, r] = sum_c jac[b, 3r+c] * v[b, c]
    #   vrep[b, k] = v[b, k % 3] for k < 12 (MXU replication, no lane concat)
    #   triplet group-sum lands in cols 12:16 via smat (cols 0:12 of that dot are zero)
    vrep = jnp.dot(v.astype(jnp.bfloat16), rmat, preferred_element_type=jnp.float32)   # (B, 16)
    out_ref[...] = y16 + jnp.dot((y16 * vrep).astype(jnp.bfloat16), smat,
                                 preferred_element_type=jnp.float32)                   # (B, 16)


def init_params(key):
    """Deterministic parameter init matching the module's shapes.
    Linear: uniform(-1/sqrt(fan_in), 1/sqrt(fan_in)); BatchNorm: gamma=1, beta=0."""
    ks = jax.random.split(key, 6)

    def linear(kw, kb, fan_in, fan_out):
        bound = 1.0 / jnp.sqrt(fan_in)
        w = jax.random.uniform(kw, (fan_in, fan_out), jnp.float32, -bound, bound)
        b = jax.random.uniform(kb, (1, fan_out), jnp.float32, -bound, bound)
        return w, b

    w1, b1 = linear(ks[0], ks[1], JAC, HIDDEN)
    w2, b2 = linear(ks[2], ks[3], HIDDEN, HIDDEN)
    w3, b3 = linear(ks[4], ks[5], HIDDEN, JAC)
    return dict(
        w1=w1, b1=b1, g1=jnp.ones((1, HIDDEN), jnp.float32), be1=jnp.zeros((1, HIDDEN), jnp.float32),
        w2=w2, b2=b2, g2=jnp.ones((1, HIDDEN), jnp.float32), be2=jnp.zeros((1, HIDDEN), jnp.float32),
        w3=w3, b3=b3,
    )


def pack_params(params):
    """Pack the 10 parameter tensors + 2 structural constants into ONE bf16 slab.
    Done once, outside the hot path."""
    slab = np.zeros((SLAB_ROWS, HIDDEN), np.float32)
    slab[_ROW_B1, :] = np.asarray(params["b1"]).reshape(-1)
    slab[_ROW_G1, :] = np.asarray(params["g1"]).reshape(-1)
    slab[_ROW_BE1, :] = np.asarray(params["be1"]).reshape(-1)
    slab[_ROW_B2, :] = np.asarray(params["b2"]).reshape(-1)
    slab[_ROW_G2, :] = np.asarray(params["g2"]).reshape(-1)
    slab[_ROW_BE2, :] = np.asarray(params["be2"]).reshape(-1)
    slab[_ROW_B3, :JAC] = np.asarray(params["b3"]).reshape(-1)
    slab[_W1_ROW0:_W1_ROW0 + JAC, :] = np.asarray(params["w1"])
    slab[_W2_ROW0:_W2_ROW0 + HIDDEN, :] = np.asarray(params["w2"])
    slab[_W3_ROW0:_W3_ROW0 + HIDDEN, :JAC] = np.asarray(params["w3"])
    for k in range(JAC):
        slab[_RMAT_ROW0 + (k % 3), k] = 1.0            # vrep[:, k] = v[:, k % 3]
        slab[_SMAT_ROW0 + k, JAC + k // 3] = 1.0       # triplet group-sum into cols 12:16
    return jnp.asarray(slab, dtype=jnp.bfloat16)


def synthetic_base_model(base_w, points, tcp_velocity):
    # TODO(synk): base_model is an external, unspecified module; use a deterministic
    # synthetic stand-in that emits (prediction, jacobian of shape (B, 4, 3)).
    feat = jnp.mean(points, axis=1)                    # (B, 3)
    jac = jnp.tanh(feat @ base_w).reshape(-1, 4, 3)    # (B, 4, 3)
    prediction = jnp.sum(jac, axis=(1, 2))             # (B,)
    return prediction, jac


def finetune_forward(slab, jacobian, tcp_velocity):
    """Pallas-call wrapper. jacobian: (B, 4, 3), tcp_velocity: (B, 3).

    Single-block, ungridded path (whole batch fits trivially in VMEM on all of
    v5e/v6e/v7x at the batch sizes this module is used with).  For very large B
    this would need a batch grid with a two-pass BatchNorm-stats reduction, since
    batch statistics couple all rows.
    """
    B = jacobian.shape[0]
    x = jacobian.reshape(B, JAC).astype(jnp.float32)   # free view, no concat / HBM round trip
    v = tcp_velocity.astype(jnp.float32)

    vmem = pl.BlockSpec(memory_space=pltpu.MemorySpace.VMEM)
    out16 = pl.pallas_call(
        finetune_kernel,
        out_shape=jax.ShapeDtypeStruct((B, OUT_W), jnp.float32),
        in_specs=[vmem, vmem, vmem],
        out_specs=vmem,
    )(x, v, slab)

    new_jacobian = out16[:, :JAC].reshape(B, 4, 3)
    output = out16[:, JAC:JAC + 4]
    return output, new_jacobian


def reference_forward(params, jacobian, tcp_velocity):
    """Pure-JAX f32 reference of the PyTorch forward (training-mode BatchNorm)."""
    B = jacobian.shape[0]
    x = jacobian.reshape(B, JAC).astype(jnp.float32)
    v = tcp_velocity.astype(jnp.float32)

    def block(h, w, b, g, be):
        h = h @ w + b
        mu = jnp.mean(h, axis=0, keepdims=True)
        var = jnp.mean((h - mu) ** 2, axis=0, keepdims=True)
        h = (h - mu) / jnp.sqrt(var + EPS) * g + be
        return jnp.where(h >= 0, h, NEG_SLOPE * h)

    h = block(x, params["w1"], params["b1"], params["g1"], params["be1"])
    h = block(h, params["w2"], params["b2"], params["g2"], params["be2"])
    y = h @ params["w3"] + params["b3"]
    new_jac = y.reshape(B, 4, 3)
    out = jnp.einsum("brc,bc->br", new_jac, v)
    return out, new_jac


if __name__ == "__main__":
    key = jax.random.PRNGKey(0)
    k_params, k_base, k_pts, k_vel = jax.random.split(key, 4)

    params = init_params(k_params)
    slab = pack_params(params)
    base_w = jax.random.normal(k_base, (3, JAC), jnp.float32) * 0.5

    B, P = 8, 16
    points = jax.random.normal(k_pts, (B, P, 3), jnp.float32)
    tcp_velocity = jax.random.normal(k_vel, (B, 3), jnp.float32)

    # fake_xdot = [1,1,1] in the reference forward is unused; omitted.
    _prediction, jacobian = synthetic_base_model(base_w, points, tcp_velocity)

    fwd = jax.jit(finetune_forward)
    output, new_jacobian = fwd(slab, jacobian, tcp_velocity)
    jax.block_until_ready((output, new_jacobian))

    assert output.shape == (B, 4) and new_jacobian.shape == (B, 4, 3)
    assert bool(jnp.isfinite(output).all()) and bool(jnp.isfinite(new_jacobian).all())

    ref_out, ref_jac = reference_forward(params, jacobian, tcp_velocity)
    assert bool(jnp.allclose(new_jacobian, ref_jac, rtol=5e-2, atol=5e-2))
    assert bool(jnp.allclose(output, ref_out, rtol=5e-2, atol=5e-2))

    print("KERNEL_OK")
</pallas_src>

<mosaic_0001>
module attributes {stable_mosaic.version = 11 : i64} {
  func.func @finetune_kernel(%arg0: memref<8x12xf32, #tpu.memory_space<vmem>>, %arg1: memref<8x3xf32, #tpu.memory_space<vmem>>, %arg2: memref<192x64xbf16, #tpu.memory_space<vmem>>, %arg3: memref<8x16xf32, #tpu.memory_space<vmem>>) attributes {dimension_semantics = [], scalar_prefetch = 0 : i64, scratch_operands = 0 : i64, tpu.core_type = #tpu.core_type<tc>} {
    %c0 = arith.constant 0 : index
    %c0_0 = arith.constant 0 : index
    %0 = vector.load %arg0[%c0, %c0_0] : memref<8x12xf32, #tpu.memory_space<vmem>>, vector<8x12xf32>
    %c0_1 = arith.constant 0 : index
    %c0_2 = arith.constant 0 : index
    %1 = vector.load %arg1[%c0_1, %c0_2] : memref<8x3xf32, #tpu.memory_space<vmem>>, vector<8x3xf32>
    %c0_3 = arith.constant 0 : index
    %c0_4 = arith.constant 0 : index
    %2 = vector.load %arg2[%c0_3, %c0_4] : memref<192x64xbf16, #tpu.memory_space<vmem>>, vector<8x64xbf16>
    %3 = arith.extf %2 : vector<8x64xbf16> to vector<8x64xf32>
    %4 = vector.extract_strided_slice %3 {offsets = [0, 0], sizes = [1, 64], strides = [1, 1]} : vector<8x64xf32> to vector<1x64xf32>
    %5 = vector.extract_strided_slice %3 {offsets = [1, 0], sizes = [1, 64], strides = [1, 1]} : vector<8x64xf32> to vector<1x64xf32>
    %6 = vector.extract_strided_slice %3 {offsets = [2, 0], sizes = [1, 64], strides = [1, 1]} : vector<8x64xf32> to vector<1x64xf32>
    %7 = vector.extract_strided_slice %3 {offsets = [3, 0], sizes = [1, 64], strides = [1, 1]} : vector<8x64xf32> to vector<1x64xf32>
    %8 = vector.extract_strided_slice %3 {offsets = [4, 0], sizes = [1, 64], strides = [1, 1]} : vector<8x64xf32> to vector<1x64xf32>
    %9 = vector.extract_strided_slice %3 {offsets = [5, 0], sizes = [1, 64], strides = [1, 1]} : vector<8x64xf32> to vector<1x64xf32>
    %10 = vector.extract_strided_slice %3 {offsets = [6, 0], sizes = [1, 16], strides = [1, 1]} : vector<8x64xf32> to vector<1x16xf32>
    %c16 = arith.constant 16 : index
    %c0_5 = arith.constant 0 : index
    %11 = vector.load %arg2[%c16, %c0_5] : memref<192x64xbf16, #tpu.memory_space<vmem>>, vector<12x64xbf16>
    %c32 = arith.constant 32 : index
    %c0_6 = arith.constant 0 : index
    %12 = vector.load %arg2[%c32, %c0_6] : memref<192x64xbf16, #tpu.memory_space<vmem>>, vector<64x64xbf16>
    %c96 = arith.constant 96 : index
    %c0_7 = arith.constant 0 : index
    %13 = vector.load %arg2[%c96, %c0_7] : memref<192x64xbf16, #tpu.memory_space<vmem>>, vector<64x16xbf16>
    %c160 = arith.constant 160 : index
    %c0_8 = arith.constant 0 : index
    %14 = vector.load %arg2[%c160, %c0_8] : memref<192x64xbf16, #tpu.memory_space<vmem>>, vector<3x16xbf16>
    %c176 = arith.constant 176 : index
    %c0_9 = arith.constant 0 : index
    %15 = vector.load %arg2[%c176, %c0_9] : memref<192x64xbf16, #tpu.memory_space<vmem>>, vector<16x16xbf16>
    %cst = arith.constant 1.000000e+00 : bf16
    %16 = vector.broadcast %cst : bf16 to vector<1x8xbf16>
    %17 = arith.truncf %0 : vector<8x12xf32> to vector<8x12xbf16>
    %cst_10 = arith.constant dense<0.000000e+00> : vector<8x64xf32>
    %18 = tpu.matmul %17, %11, %cst_10 {dimension_numbers = #tpu.dot_dimension_numbers<[1], [0], [0], [1], [0, 0, 1, 1], [], []>} : vector<8x12xbf16>, vector<12x64xbf16>, vector<8x64xf32> -> vector<8x64xf32>
    %19 = vector.broadcast %4 : vector<1x64xf32> to vector<8x64xf32>
    %20 = arith.addf %18, %19 : vector<8x64xf32>
    %21 = arith.truncf %20 : vector<8x64xf32> to vector<8x64xbf16>
    %22 = arith.mulf %20, %20 : vector<8x64xf32>
    %23 = arith.truncf %22 : vector<8x64xf32> to vector<8x64xbf16>
    %cst_11 = arith.constant dense<0.000000e+00> : vector<1x64xf32>
    %24 = tpu.matmul %16, %21, %cst_11 {dimension_numbers = #tpu.dot_dimension_numbers<[1], [0], [0], [1], [0, 0, 1, 1], [], []>} : vector<1x8xbf16>, vector<8x64xbf16>, vector<1x64xf32> -> vector<1x64xf32>
    %cst_12 = arith.constant dense<0.000000e+00> : vector<1x64xf32>
    %25 = tpu.matmul %16, %23, %cst_12 {dimension_numbers = #tpu.dot_dimension_numbers<[1], [0], [0], [1], [0, 0, 1, 1], [], []>} : vector<1x8xbf16>, vector<8x64xbf16>, vector<1x64xf32> -> vector<1x64xf32>
    %cst_13 = arith.constant 1.250000e-01 : f32
    %26 = vector.broadcast %cst_13 : f32 to vector<1x64xf32>
    %27 = arith.mulf %24, %26 : vector<1x64xf32>
    %cst_14 = arith.constant 1.250000e-01 : f32
    %28 = vector.broadcast %cst_14 : f32 to vector<1x64xf32>
    %29 = arith.mulf %25, %28 : vector<1x64xf32>
    %30 = arith.mulf %27, %27 : vector<1x64xf32>
    %31 = arith.subf %29, %30 : vector<1x64xf32>
    %cst_15 = arith.constant 0.000000e+00 : f32
    %32 = vector.broadcast %cst_15 : f32 to vector<1x64xf32>
    %33 = arith.maximumf %31, %32 : vector<1x64xf32>
    %34 = vector.broadcast %27 : vector<1x64xf32> to vector<8x64xf32>
    %35 = arith.subf %20, %34 : vector<8x64xf32>
    %cst_16 = arith.constant 9.99999974E-6 : f32
    %36 = vector.broadcast %cst_16 : f32 to vector<1x64xf32>
    %37 = arith.addf %33, %36 : vector<1x64xf32>
    %38 = math.rsqrt %37 : vector<1x64xf32>
    %39 = vector.broadcast %38 : vector<1x64xf32> to vector<8x64xf32>
    %40 = arith.mulf %35, %39 : vector<8x64xf32>
    %41 = vector.broadcast %5 : vector<1x64xf32> to vector<8x64xf32>
    %42 = arith.mulf %40, %41 : vector<8x64xf32>
    %43 = vector.broadcast %6 : vector<1x64xf32> to vector<8x64xf32>
    %44 = arith.addf %42, %43 : vector<8x64xf32>
    %cst_17 = arith.constant 0.00999999977 : f32
    %45 = vector.broadcast %cst_17 : f32 to vector<8x64xf32>
    %46 = arith.mulf %45, %44 : vector<8x64xf32>
    %47 = arith.maximumf %44, %46 : vector<8x64xf32>
    %48 = arith.truncf %47 : vector<8x64xf32> to vector<8x64xbf16>
    %cst_18 = arith.constant dense<0.000000e+00> : vector<8x64xf32>
    %49 = tpu.matmul %48, %12, %cst_18 {dimension_numbers = #tpu.dot_dimension_numbers<[1], [0], [0], [1], [0, 0, 1, 1], [], []>} : vector<8x64xbf16>, vector<64x64xbf16>, vector<8x64xf32> -> vector<8x64xf32>
    %50 = vector.broadcast %7 : vector<1x64xf32> to vector<8x64xf32>
    %51 = arith.addf %49, %50 : vector<8x64xf32>
    %52 = arith.truncf %51 : vector<8x64xf32> to vector<8x64xbf16>
    %53 = arith.mulf %51, %51 : vector<8x64xf32>
    %54 = arith.truncf %53 : vector<8x64xf32> to vector<8x64xbf16>
    %cst_19 = arith.constant dense<0.000000e+00> : vector<1x64xf32>
    %55 = tpu.matmul %16, %52, %cst_19 {dimension_numbers = #tpu.dot_dimension_numbers<[1], [0], [0], [1], [0, 0, 1, 1], [], []>} : vector<1x8xbf16>, vector<8x64xbf16>, vector<1x64xf32> -> vector<1x64xf32>
    %cst_20 = arith.constant dense<0.000000e+00> : vector<1x64xf32>
    %56 = tpu.matmul %16, %54, %cst_20 {dimension_numbers = #tpu.dot_dimension_numbers<[1], [0], [0], [1], [0, 0, 1, 1], [], []>} : vector<1x8xbf16>, vector<8x64xbf16>, vector<1x64xf32> -> vector<1x64xf32>
    %cst_21 = arith.constant 1.250000e-01 : f32
    %57 = vector.broadcast %cst_21 : f32 to vector<1x64xf32>
    %58 = arith.mulf %55, %57 : vector<1x64xf32>
    %cst_22 = arith.constant 1.250000e-01 : f32
    %59 = vector.broadcast %cst_22 : f32 to vector<1x64xf32>
    %60 = arith.mulf %56, %59 : vector<1x64xf32>
    %61 = arith.mulf %58, %58 : vector<1x64xf32>
    %62 = arith.subf %60, %61 : vector<1x64xf32>
    %cst_23 = arith.constant 0.000000e+00 : f32
    %63 = vector.broadcast %cst_23 : f32 to vector<1x64xf32>
    %64 = arith.maximumf %62, %63 : vector<1x64xf32>
    %65 = vector.broadcast %58 : vector<1x64xf32> to vector<8x64xf32>
    %66 = arith.subf %51, %65 : vector<8x64xf32>
    %cst_24 = arith.constant 9.99999974E-6 : f32
    %67 = vector.broadcast %cst_24 : f32 to vector<1x64xf32>
    %68 = arith.addf %64, %67 : vector<1x64xf32>
    %69 = math.rsqrt %68 : vector<1x64xf32>
    %70 = vector.broadcast %69 : vector<1x64xf32> to vector<8x64xf32>
    %71 = arith.mulf %66, %70 : vector<8x64xf32>
    %72 = vector.broadcast %8 : vector<1x64xf32> to vector<8x64xf32>
    %73 = arith.mulf %71, %72 : vector<8x64xf32>
    %74 = vector.broadcast %9 : vector<1x64xf32> to vector<8x64xf32>
    %75 = arith.addf %73, %74 : vector<8x64xf32>
    %cst_25 = arith.constant 0.00999999977 : f32
    %76 = vector.broadcast %cst_25 : f32 to vector<8x64xf32>
    %77 = arith.mulf %76, %75 : vector<8x64xf32>
    %78 = arith.maximumf %75, %77 : vector<8x64xf32>
    %79 = arith.truncf %78 : vector<8x64xf32> to vector<8x64xbf16>
    %cst_26 = arith.constant dense<0.000000e+00> : vector<8x16xf32>
    %80 = tpu.matmul %79, %13, %cst_26 {dimension_numbers = #tpu.dot_dimension_numbers<[1], [0], [0], [1], [0, 0, 1, 1], [], []>} : vector<8x64xbf16>, vector<64x16xbf16>, vector<8x16xf32> -> vector<8x16xf32>
    %81 = vector.broadcast %10 : vector<1x16xf32> to vector<8x16xf32>
    %82 = arith.addf %80, %81 : vector<8x16xf32>
    %83 = arith.truncf %1 : vector<8x3xf32> to vector<8x3xbf16>
    %cst_27 = arith.constant dense<0.000000e+00> : vector<8x16xf32>
    %84 = tpu.matmul %83, %14, %cst_27 {dimension_numbers = #tpu.dot_dimension_numbers<[1], [0], [0], [1], [0, 0, 1, 1], [], []>} : vector<8x3xbf16>, vector<3x16xbf16>, vector<8x16xf32> -> vector<8x16xf32>
    %85 = arith.mulf %82, %84 : vector<8x16xf32>
    %86 = arith.truncf %85 : vector<8x16xf32> to vector<8x16xbf16>
    %cst_28 = arith.constant dense<0.000000e+00> : vector<8x16xf32>
    %87 = tpu.matmul %86, %15, %cst_28 {dimension_numbers = #tpu.dot_dimension_numbers<[1], [0], [0], [1], [0, 0, 1, 1], [], []>} : vector<8x16xbf16>, vector<16x16xbf16>, vector<8x16xf32> -> vector<8x16xf32>
    %88 = arith.addf %82, %87 : vector<8x16xf32>
    %c0_29 = arith.constant 0 : index
    %c0_30 = arith.constant 0 : index
    %89 = vector.load %arg3[%c0_29, %c0_30] : memref<8x16xf32, #tpu.memory_space<vmem>>, vector<8x16xf32>
    tpu.vector_store %arg3[%c0_29, %c0_30], %88 {strides = array<i32>} : memref<8x16xf32, #tpu.memory_space<vmem>>, vector<8x16xf32>,
    return
  }
}

</mosaic_0001>

<llo_original>
// kernel: finetune_forward.1
$region0: #{finetune_forward.1}
  #allocation0 [shape = 'u32[]', space=smem, size = 0x4, offset = 0x4, fixed_abs, tag = 'smem constant byte address 0x4 - core index']
  #allocation1 [shape = 'u32[144,128]{1,0:T(1,128)}', space=vmem, size = 0x12000, scoped, tag = 'internal scratch']
  %s0 = inlined_call_operand.vmem [shape: f32[8,12], index: 0, kind: input, shape index: {}]
  %s1 = inlined_call_operand.vmem [shape: f32[8,3], index: 1, kind: input, shape index: {}]
  %s2 = inlined_call_operand.vmem [shape: bf16[192,64], index: 2, kind: input, shape index: {}]
  %s3 = inlined_call_operand.vmem [shape: f32[8,16], index: 3, kind: output, shape index: {}]
  %s4 = sld [smem:[#allocation0]]
  $region22: #{finetune_forward.1} parent=0
    _
  %s6 = ssub.s32 1, %s4
  %s7 = scalar_select 0, %s6, %s4
  // Predicated region
  $region2: #{finetune_forward.1} parent=0 // pred_check
    _
  $region3: #{finetune_forward.1} parent=0 // pred_check_branch
    %9 = sbr.rel (0) target = $region5
  $region4: #{finetune_forward.1} parent=0 // pred_region
    _
  $region5: #{finetune_forward.1} parent=0 // pred_fallthru
    _
  // Predicated region
  $region6: #{finetune_forward.1} parent=0 // pred_check
    _
  $region7: #{finetune_forward.1} parent=0 // pred_check_branch
    %11 = sbr.rel (0) target = $region9
  $region8: #{finetune_forward.1} parent=0 // pred_region
    _
  $region9: #{finetune_forward.1} parent=0 // pred_fallthru
    _
  // Predicated region
  $region10: #{finetune_forward.1} parent=0 // pred_check
    _
  $region11: #{finetune_forward.1} parent=0 // pred_check_branch
    %13 = sbr.rel (0) target = $region13
  $region12: #{finetune_forward.1} parent=0 // pred_region
    _
  $region13: #{finetune_forward.1} parent=0 // pred_fallthru
    _
  %v16 = vld [vmem:[%s0] sm:$0xff]
  %v17 = vld [vmem:[%s1] sm:$0xff]
  %v18 = vld [vmem:[%s2] sm:$0xf]
  %v19 = vunpack.c.l.bf16 %v18
  %v20 = vld [vmem:[%s2 + $0x8] sm:$0xf]
  %v21 = vld [vmem:[%s2 + $0xc] sm:$0x3]
  %v22 = vld [vmem:[%s2 + $0x10] sm:$0xf]
  %v23 = vld [vmem:[%s2 + $0x14] sm:$0xf]
  %v24 = vld [vmem:[%s2 + $0x18] sm:$0xf]
  %v25 = vld [vmem:[%s2 + $0x1c] sm:$0xf]
  %v26 = vld [vmem:[%s2 + $0x20] sm:$0xf]
  %v27 = vld [vmem:[%s2 + $0x24] sm:$0xf]
  %v28 = vld [vmem:[%s2 + $0x28] sm:$0xf]
  %v29 = vld [vmem:[%s2 + $0x2c] sm:$0xf]
  %v30 = vld [vmem:[%s2 + $0x30] sm:$0xf]
  %v31 = vld [vmem:[%s2 + $0x34] sm:$0xf]
  %v32 = vld [vmem:[%s2 + $0x38] sm:$0xf]
  %v33 = vld [vmem:[%s2 + $0x3c] sm:$0xf]
  %v34 = vld [vmem:[%s2 + $0x40] sm:$0xf]
  %v35 = vld [vmem:[%s2 + $0x44] sm:$0xf]
  %v36 = vld [vmem:[%s2 + $0x48] sm:$0xf]
  %v37 = vld [vmem:[%s2 + $0x4c] sm:$0xf]
  %v38 = vld [vmem:[%s2 + $0x50] sm:$0x3]
  %v39 = vld [vmem:[%s2 + $0x58] sm:$0xf]
  %v40 = vld [vmem:[%s2 + $0x5c] sm:$0xf]
  %v41 = vpack.c.bf16 %v16, %v16
  %v42 = vlaneseq
  %v43 = vshrl.u32 %v42, 7
  %v44 = vsub.s32 0, %v43
  %v45 = vrot.slane %v19, %v44
  %v48 = vunpack.c.l.b16 %v20
  %v49 = vunpack.c.l.b16 %v21
  %v50 = vpack.c.b16 %v49, %v48
  %vm51 = vcmask 97280
  %v53 = vsel %vm51, %v41, 0
  %vm55 = vcmask 1045504
  %v57 = vsel %vm55, %v50, 0
  %59 = vmatprep.subr.bf16.mxu0 0
  %60 = vmatpush1.bf16.msra.mxu0 %v57
  %61 = vmatprep.subr.bf16.mxu0 0
  %62 = vmatpush1.bf16.msra.mxu0 0
  %63 = vmatprep.subr.bf16.mxu0 0
  %64 = vmatpush1.bf16.msra.mxu0 0
  %65 = vmatprep.subr.bf16.mxu0 0
  %66 = vmatpush1.bf16.msra.mxu0 0
  %67 = vmatprep.subr.bf16.mxu0 0
  %68 = vmatpush1.bf16.msra.mxu0 0
  %69 = vmatprep.subr.bf16.mxu0 0
  %70 = vmatpush1.bf16.msra.mxu0 0
  %71 = vmatprep.subr.bf16.mxu0 0
  %72 = vmatpush1.bf16.msra.mxu0 0
  %73 = vmatprep.subr.bf16.mxu0 0
  %74 = vmatpush1.bf16.msra.mxu0 0
  %75 = vmatprep.subr.bf16.mxu0 0
  %76 = vmatpush1.bf16.msra.mxu0 0
  %77 = vmatprep.subr.bf16.mxu0 0
  %78 = vmatpush1.bf16.msra.mxu0 0
  %79 = vmatprep.subr.bf16.mxu0 0
  %80 = vmatpush1.bf16.msra.mxu0 0
  %81 = vmatprep.subr.bf16.mxu0 0
  %82 = vmatpush1.bf16.msra.mxu0 0
  %83 = vmatprep.subr.bf16.mxu0 0
  %84 = vmatpush1.bf16.msra.mxu0 0
  %85 = vmatprep.subr.bf16.mxu0 0
  %86 = vmatpush1.bf16.msra.mxu0 0
  %87 = vmatprep.subr.bf16.mxu0 0
  %88 = vmatpush1.bf16.msra.mxu0 0
  %89 = vmatprep.subr.bf16.mxu0 0
  %90 = vmatpush1.bf16.msra.mxu0 0
  %91 = vmatprep.mubr.bf16.mxu0 0
  %92 = vmatmul.mubr.bf16.gmra.mrb[0].mxu0 %v53
  %v93 = vpop.f32.mrb[0].mxu0
  %v94 = vadd.f32 %v45, %v93
  %v95 = vpop.f32.mrb[0].mxu0
  %v96 = vpop.f32.mrb[0].mxu0
  %v97 = vpop.f32.mrb[0].mxu0
  %98 = vdwg.mxu0
  %v99 = vpack.c.bf16 %v94, %v94
  %v100 = vmul.f32 %v94, %v94
  %v101 = vpack.c.bf16 %v100, %v100
  %vm102 = vcmask 64512
  %v104 = vsel %vm102, 1065369472, 0
  %vm106 = vcmask 1043456
  %v108 = vsel %vm106, %v99, 0
  %110 = vmatprep.subr.bf16.mxu0 0
  %111 = vmatpush1.bf16.msra.mxu0 %v108
  %112 = vmatprep.subr.bf16.mxu0 0
  %113 = vmatpush1.bf16.msra.mxu0 0
  %114 = vmatprep.subr.bf16.mxu0 0
  %115 = vmatpush1.bf16.msra.mxu0 0
  %116 = vmatprep.subr.bf16.mxu0 0
  %117 = vmatpush1.bf16.msra.mxu0 0
  %118 = vmatprep.subr.bf16.mxu0 0
  %119 = vmatpush1.bf16.msra.mxu0 0
  %120 = vmatprep.subr.bf16.mxu0 0
  %121 = vmatpush1.bf16.msra.mxu0 0
  %122 = vmatprep.subr.bf16.mxu0 0
  %123 = vmatpush1.bf16.msra.mxu0 0
  %124 = vmatprep.subr.bf16.mxu0 0
  %125 = vmatpush1.bf16.msra.mxu0 0
  %126 = vmatprep.subr.bf16.mxu0 0
  %127 = vmatpush1.bf16.msra.mxu0 0
  %128 = vmatprep.subr.bf16.mxu0 0
  %129 = vmatpush1.bf16.msra.mxu0 0
  %130 = vmatprep.subr.bf16.mxu0 0
  %131 = vmatpush1.bf16.msra.mxu0 0
  %132 = vmatprep.subr.bf16.mxu0 0
  %133 = vmatpush1.bf16.msra.mxu0 0
  %134 = vmatprep.subr.bf16.mxu0 0
  %135 = vmatpush1.bf16.msra.mxu0 0
  %136 = vmatprep.subr.bf16.mxu0 0
  %137 = vmatpush1.bf16.msra.mxu0 0
  %138 = vmatprep.subr.bf16.mxu0 0
  %139 = vmatpush1.bf16.msra.mxu0 0
  %140 = vmatprep.subr.bf16.mxu0 0
  %141 = vmatpush1.bf16.msra.mxu0 0
  %142 = vmatprep.mubr.bf16.mxu0 0
  %143 = vmatmul.mubr.bf16.gmra.mrb[0].mxu0 %v104
  %v144 = vpop.f32.mrb[0].mxu0
  %v145 = vadd.f32 0.0, %v144
  %v146 = vpop.f32.mrb[0].mxu0
  %v147 = vpop.f32.mrb[0].mxu0
  %v148 = vpop.f32.mrb[0].mxu0
  %149 = vdwg.mxu0
  %v151 = vsel %vm106, %v101, 0
  %153 = vmatprep.subr.bf16.mxu0 0
  %154 = vmatpush1.bf16.msra.mxu0 %v151
  %155 = vmatprep.subr.bf16.mxu0 0
  %156 = vmatpush1.bf16.msra.mxu0 0
  %157 = vmatprep.subr.bf16.mxu0 0
  %158 = vmatpush1.bf16.msra.mxu0 0
  %159 = vmatprep.subr.bf16.mxu0 0
  %160 = vmatpush1.bf16.msra.mxu0 0
  %161 = vmatprep.subr.bf16.mxu0 0
  %162 = vmatpush1.bf16.msra.mxu0 0
  %163 = vmatprep.subr.bf16.mxu0 0
  %164 = vmatpush1.bf16.msra.mxu0 0
  %165 = vmatprep.subr.bf16.mxu0 0
  %166 = vmatpush1.bf16.msra.mxu0 0
  %167 = vmatprep.subr.bf16.mxu0 0
  %168 = vmatpush1.bf16.msra.mxu0 0
  %169 = vmatprep.subr.bf16.mxu0 0
  %170 = vmatpush1.bf16.msra.mxu0 0
  %171 = vmatprep.subr.bf16.mxu0 0
  %172 = vmatpush1.bf16.msra.mxu0 0
  %173 = vmatprep.subr.bf16.mxu0 0
  %174 = vmatpush1.bf16.msra.mxu0 0
  %175 = vmatprep.subr.bf16.mxu0 0
  %176 = vmatpush1.bf16.msra.mxu0 0
  %177 = vmatprep.subr.bf16.mxu0 0
  %178 = vmatpush1.bf16.msra.mxu0 0
  %179 = vmatprep.subr.bf16.mxu0 0
  %180 = vmatpush1.bf16.msra.mxu0 0
  %181 = vmatprep.subr.bf16.mxu0 0
  %182 = vmatpush1.bf16.msra.mxu0 0
  %183 = vmatprep.subr.bf16.mxu0 0
  %184 = vmatpush1.bf16.msra.mxu0 0
  %185 = vmatprep.mubr.bf16.mxu0 0
  %186 = vmatmul.mubr.bf16.gmra.mrb[0].mxu0 %v104
  %v187 = vpop.f32.mrb[0].mxu0
  %v188 = vadd.f32 0.0, %v187
  %v189 = vpop.f32.mrb[0].mxu0
  %v190 = vpop.f32.mrb[0].mxu0
  %v191 = vpop.f32.mrb[0].mxu0
  %192 = vdwg.mxu0
  %v193 = vmul.f32 %v145, 0.125
  %v194 = vmul.f32 %v188, 0.125
  %v195 = vmul.f32 %v193, %v193
  %v196 = vsub.f32 %v194, %v195
  %v197 = vmax.f32 %v196, 0.0
  %v198 = vlaneseq
  %v199 = vshrl.u32 %v198, 7
  %v200 = vsub.s32 0, %v199
  %v201 = vrot.slane %v193, %v200
  %v202 = vsub.f32 %v94, %v201
  %v203 = vadd.f32 %v197, 1e-05
  %v204 = vrsqrt.pop %v203
  %v205 = vlaneseq
  %v206 = vshrl.u32 %v205, 7
  %v207 = vsub.s32 0, %v206
  %v208 = vrot.slane %v204, %v207
  %v209 = vmul.f32 %v202, %v208
  %v210 = vlaneseq
  %v211 = vshrl.u32 %v210, 7
  %v212 = vsub.s32 1, %v211
  %v213 = vrot.slane %v19, %v212
  %v214 = vmul.f32 %v209, %v213
  %v215 = vlaneseq
  %v216 = vshrl.u32 %v215, 7
  %v217 = vsub.s32 2, %v216
  %v218 = vrot.slane %v19, %v217
  %v219 = vadd.f32 %v214, %v218
  %v220 = vmul.f32 %v219, 0.01
  %v221 = vmax.f32 %v219, %v220
  %v222 = vpack.c.bf16 %v221, %v221
  %v223 = vlaneseq
  %v224 = vshrl.u32 %v223, 7
  %v225 = vsub.s32 3, %v224
  %v226 = vrot.slane %v19, %v225
  %v235 = vunpack.c.l.b16 %v22
  %v236 = vunpack.c.l.b16 %v23
  %v237 = vunpack.c.l.b16 %v24
  %v238 = vunpack.c.l.b16 %v25
  %v239 = vunpack.c.l.b16 %v26
  %v240 = vunpack.c.l.b16 %v27
  %v241 = vunpack.c.l.b16 %v28
  %v242 = vunpack.c.l.b16 %v29
  %v243 = vpack.c.b16 %v236, %v235
  %v244 = vpack.c.b16 %v238, %v237
  %v245 = vpack.c.b16 %v240, %v239
  %v246 = vpack.c.b16 %v242, %v241
  %vm251 = vcmask 523264
  %v253 = vsel %vm251, %v222, 0
  %255 = vmatprep.subr.bf16.mxu0 0
  %256 = vmatpush1.bf16.msra.mxu0 %v243
  %257 = vmatprep.subr.bf16.mxu0 0
  %258 = vmatpush1.bf16.msra.mxu0 %v244
  %259 = vmatprep.subr.bf16.mxu0 0
  %260 = vmatpush1.bf16.msra.mxu0 %v245
  %261 = vmatprep.subr.bf16.mxu0 0
  %262 = vmatpush1.bf16.msra.mxu0 %v246
  %263 = vmatprep.subr.bf16.mxu0 0
  %264 = vmatpush1.bf16.msra.mxu0 0
  %265 = vmatprep.subr.bf16.mxu0 0
  %266 = vmatpush1.bf16.msra.mxu0 0
  %267 = vmatprep.subr.bf16.mxu0 0
  %268 = vmatpush1.bf16.msra.mxu0 0
  %269 = vmatprep.subr.bf16.mxu0 0
  %270 = vmatpush1.bf16.msra.mxu0 0
  %271 = vmatprep.subr.bf16.mxu0 0
  %272 = vmatpush1.bf16.msra.mxu0 0
  %273 = vmatprep.subr.bf16.mxu0 0
  %274 = vmatpush1.bf16.msra.mxu0 0
  %275 = vmatprep.subr.bf16.mxu0 0
  %276 = vmatpush1.bf16.msra.mxu0 0
  %277 = vmatprep.subr.bf16.mxu0 0
  %278 = vmatpush1.bf16.msra.mxu0 0
  %279 = vmatprep.subr.bf16.mxu0 0
  %280 = vmatpush1.bf16.msra.mxu0 0
  %281 = vmatprep.subr.bf16.mxu0 0
  %282 = vmatpush1.bf16.msra.mxu0 0
  %283 = vmatprep.subr.bf16.mxu0 0
  %284 = vmatpush1.bf16.msra.mxu0 0
  %285 = vmatprep.subr.bf16.mxu0 0
  %286 = vmatpush1.bf16.msra.mxu0 0
  %287 = vmatprep.mubr.bf16.mxu0 0
  %288 = vmatmul.mubr.bf16.gmra.mrb[0].mxu0 %v253
  %v289 = vpop.f32.mrb[0].mxu0
  %v290 = vadd.f32 %v226, %v289
  %v291 = vpop.f32.mrb[0].mxu0
  %v292 = vpop.f32.mrb[0].mxu0
  %v293 = vpop.f32.mrb[0].mxu0
  %294 = vdwg.mxu0
  %v295 = vpack.c.bf16 %v290, %v290
  %v296 = vmul.f32 %v290, %v290
  %v297 = vpack.c.bf16 %v296, %v296
  %v299 = vsel %vm106, %v295, 0
  %301 = vmatprep.subr.bf16.mxu0 0
  %302 = vmatpush1.bf16.msra.mxu0 %v299
  %303 = vmatprep.subr.bf16.mxu0 0
  %304 = vmatpush1.bf16.msra.mxu0 0
  %305 = vmatprep.subr.bf16.mxu0 0
  %306 = vmatpush1.bf16.msra.mxu0 0
  %307 = vmatprep.subr.bf16.mxu0 0
  %308 = vmatpush1.bf16.msra.mxu0 0
  %309 = vmatprep.subr.bf16.mxu0 0
  %310 = vmatpush1.bf16.msra.mxu0 0
  %311 = vmatprep.subr.bf16.mxu0 0
  %312 = vmatpush1.bf16.msra.mxu0 0
  %313 = vmatprep.subr.bf16.mxu0 0
  %314 = vmatpush1.bf16.msra.mxu0 0
  %315 = vmatprep.subr.bf16.mxu0 0
  %316 = vmatpush1.bf16.msra.mxu0 0
  %317 = vmatprep.subr.bf16.mxu0 0
  %318 = vmatpush1.bf16.msra.mxu0 0
  %319 = vmatprep.subr.bf16.mxu0 0
  %320 = vmatpush1.bf16.msra.mxu0 0
  %321 = vmatprep.subr.bf16.mxu0 0
  %322 = vmatpush1.bf16.msra.mxu0 0
  %323 = vmatprep.subr.bf16.mxu0 0
  %324 = vmatpush1.bf16.msra.mxu0 0
  %325 = vmatprep.subr.bf16.mxu0 0
  %326 = vmatpush1.bf16.msra.mxu0 0
  %327 = vmatprep.subr.bf16.mxu0 0
  %328 = vmatpush1.bf16.msra.mxu0 0
  %329 = vmatprep.subr.bf16.mxu0 0
  %330 = vmatpush1.bf16.msra.mxu0 0
  %331 = vmatprep.subr.bf16.mxu0 0
  %332 = vmatpush1.bf16.msra.mxu0 0
  %333 = vmatprep.mubr.bf16.mxu0 0
  %334 = vmatmul.mubr.bf16.gmra.mrb[0].mxu0 %v104
  %v335 = vpop.f32.mrb[0].mxu0
  %v336 = vadd.f32 0.0, %v335
  %v337 = vpop.f32.mrb[0].mxu0
  %v338 = vpop.f32.mrb[0].mxu0
  %v339 = vpop.f32.mrb[0].mxu0
  %340 = vdwg.mxu0
  %v342 = vsel %vm106, %v297, 0
  %344 = vmatprep.subr.bf16.mxu0 0
  %345 = vmatpush1.bf16.msra.mxu0 %v342
  %346 = vmatprep.subr.bf16.mxu0 0
  %347 = vmatpush1.bf16.msra.mxu0 0
  %348 = vmatprep.subr.bf16.mxu0 0
  %349 = vmatpush1.bf16.msra.mxu0 0
  %350 = vmatprep.subr.bf16.mxu0 0
  %351 = vmatpush1.bf16.msra.mxu0 0
  %352 = vmatprep.subr.bf16.mxu0 0
  %353 = vmatpush1.bf16.msra.mxu0 0
  %354 = vmatprep.subr.bf16.mxu0 0
  %355 = vmatpush1.bf16.msra.mxu0 0
  %356 = vmatprep.subr.bf16.mxu0 0
  %357 = vmatpush1.bf16.msra.mxu0 0
  %358 = vmatprep.subr.bf16.mxu0 0
  %359 = vmatpush1.bf16.msra.mxu0 0
  %360 = vmatprep.subr.bf16.mxu0 0
  %361 = vmatpush1.bf16.msra.mxu0 0
  %362 = vmatprep.subr.bf16.mxu0 0
  %363 = vmatpush1.bf16.msra.mxu0 0
  %364 = vmatprep.subr.bf16.mxu0 0
  %365 = vmatpush1.bf16.msra.mxu0 0
  %366 = vmatprep.subr.bf16.mxu0 0
  %367 = vmatpush1.bf16.msra.mxu0 0
  %368 = vmatprep.subr.bf16.mxu0 0
  %369 = vmatpush1.bf16.msra.mxu0 0
  %370 = vmatprep.subr.bf16.mxu0 0
  %371 = vmatpush1.bf16.msra.mxu0 0
  %372 = vmatprep.subr.bf16.mxu0 0
  %373 = vmatpush1.bf16.msra.mxu0 0
  %374 = vmatprep.subr.bf16.mxu0 0
  %375 = vmatpush1.bf16.msra.mxu0 0
  %376 = vmatprep.mubr.bf16.mxu0 0
  %377 = vmatmul.mubr.bf16.gmra.mrb[0].mxu0 %v104
  %v378 = vpop.f32.mrb[0].mxu0
  %v379 = vadd.f32 0.0, %v378
  %v380 = vpop.f32.mrb[0].mxu0
  %v381 = vpop.f32.mrb[0].mxu0
  %v382 = vpop.f32.mrb[0].mxu0
  %383 = vdwg.mxu0
  %v384 = vmul.f32 %v336, 0.125
  %v385 = vmul.f32 %v379, 0.125
  %v386 = vmul.f32 %v384, %v384
  %v387 = vsub.f32 %v385, %v386
  %v388 = vmax.f32 %v387, 0.0
  %v389 = vlaneseq
  %v390 = vshrl.u32 %v389, 7
  %v391 = vsub.s32 0, %v390
  %v392 = vrot.slane %v384, %v391
  %v393 = vsub.f32 %v290, %v392
  %v394 = vadd.f32 %v388, 1e-05
  %v395 = vrsqrt.pop %v394
  %v396 = vlaneseq
  %v397 = vshrl.u32 %v396, 7
  %v398 = vsub.s32 0, %v397
  %v399 = vrot.slane %v395, %v398
  %v400 = vmul.f32 %v393, %v399
  %v401 = vlaneseq
  %v402 = vshrl.u32 %v401, 7
  %v403 = vsub.s32 4, %v402
  %v404 = vrot.slane %v19, %v403
  %v405 = vmul.f32 %v400, %v404
  %v406 = vlaneseq
  %v407 = vshrl.u32 %v406, 7
  %v408 = vsub.s32 5, %v407
  %v409 = vrot.slane %v19, %v408
  %v410 = vadd.f32 %v405, %v409
  %v411 = vmul.f32 %v410, 0.01
  %v412 = vmax.f32 %v410, %v411
  %v413 = vpack.c.bf16 %v412, %v412
  %v414 = vlaneseq
  %v415 = vshrl.u32 %v414, 7
  %v416 = vsub.s32 6, %v415
  %v417 = vrot.slane %v19, %v416
  %v426 = vunpack.c.l.b16 %v30
  %v427 = vunpack.c.l.b16 %v31
  %v428 = vunpack.c.l.b16 %v32
  %v429 = vunpack.c.l.b16 %v33
  %v430 = vunpack.c.l.b16 %v34
  %v431 = vunpack.c.l.b16 %v35
  %v432 = vunpack.c.l.b16 %v36
  %v433 = vunpack.c.l.b16 %v37
  %v434 = vpack.c.b16 %v427, %v426
  %v435 = vpack.c.b16 %v429, %v428
  %v436 = vpack.c.b16 %v431, %v430
  %v437 = vpack.c.b16 %v433, %v432
  %v443 = vsel %vm251, %v413, 0
  %445 = vmatprep.subr.bf16.mxu0 0
  %446 = vmatpush1.bf16.msra.mxu0 %v434
  %447 = vmatprep.subr.bf16.mxu0 0
  %448 = vmatpush1.bf16.msra.mxu0 %v435
  %449 = vmatprep.subr.bf16.mxu0 0
  %450 = vmatpush1.bf16.msra.mxu0 %v436
  %451 = vmatprep.subr.bf16.mxu0 0
  %452 = vmatpush1.bf16.msra.mxu0 %v437
  %453 = vmatprep.subr.bf16.mxu0 0
  %454 = vmatpush1.bf16.msra.mxu0 0
  %455 = vmatprep.subr.bf16.mxu0 0
  %456 = vmatpush1.bf16.msra.mxu0 0
  %457 = vmatprep.subr.bf16.mxu0 0
  %458 = vmatpush1.bf16.msra.mxu0 0
  %459 = vmatprep.subr.bf16.mxu0 0
  %460 = vmatpush1.bf16.msra.mxu0 0
  %461 = vmatprep.subr.bf16.mxu0 0
  %462 = vmatpush1.bf16.msra.mxu0 0
  %463 = vmatprep.subr.bf16.mxu0 0
  %464 = vmatpush1.bf16.msra.mxu0 0
  %465 = vmatprep.subr.bf16.mxu0 0
  %466 = vmatpush1.bf16.msra.mxu0 0
  %467 = vmatprep.subr.bf16.mxu0 0
  %468 = vmatpush1.bf16.msra.mxu0 0
  %469 = vmatprep.subr.bf16.mxu0 0
  %470 = vmatpush1.bf16.msra.mxu0 0
  %471 = vmatprep.subr.bf16.mxu0 0
  %472 = vmatpush1.bf16.msra.mxu0 0
  %473 = vmatprep.subr.bf16.mxu0 0
  %474 = vmatpush1.bf16.msra.mxu0 0
  %475 = vmatprep.subr.bf16.mxu0 0
  %476 = vmatpush1.bf16.msra.mxu0 0
  %477 = vmatprep.mubr.bf16.mxu0 0
  %478 = vmatmul.mubr.bf16.gmra.mrb[0].mxu0 %v443
  %v479 = vpop.f32.mrb[0].mxu0
  %v480 = vadd.f32 %v417, %v479
  %v481 = vpop.f32.mrb[0].mxu0
  %v482 = vpop.f32.mrb[0].mxu0
  %v483 = vpop.f32.mrb[0].mxu0
  %484 = vdwg.mxu0
  %v485 = vpack.c.bf16 %v17, %v17
  %vm486 = vcmask 23552
  %v488 = vsel %vm486, %v485, 0
  %vm490 = vcmask 1040384
  %vm491 = vcmask 1041408
  %v492 = vsel %vm490, 4294967295, 65535
  %v493 = vsel %vm491, %v492, 0
  %v495 = vand.u32 %v38, %v493
  %497 = vmatprep.subr.bf16.mxu0 0
  %498 = vmatpush1.bf16.msra.mxu0 %v495
  %499 = vmatprep.subr.bf16.mxu0 0
  %500 = vmatpush1.bf16.msra.mxu0 0
  %501 = vmatprep.subr.bf16.mxu0 0
  %502 = vmatpush1.bf16.msra.mxu0 0
  %503 = vmatprep.subr.bf16.mxu0 0
  %504 = vmatpush1.bf16.msra.mxu0 0
  %505 = vmatprep.subr.bf16.mxu0 0
  %506 = vmatpush1.bf16.msra.mxu0 0
  %507 = vmatprep.subr.bf16.mxu0 0
  %508 = vmatpush1.bf16.msra.mxu0 0
  %509 = vmatprep.subr.bf16.mxu0 0
  %510 = vmatpush1.bf16.msra.mxu0 0
  %511 = vmatprep.subr.bf16.mxu0 0
  %512 = vmatpush1.bf16.msra.mxu0 0
  %513 = vmatprep.subr.bf16.mxu0 0
  %514 = vmatpush1.bf16.msra.mxu0 0
  %515 = vmatprep.subr.bf16.mxu0 0
  %516 = vmatpush1.bf16.msra.mxu0 0
  %517 = vmatprep.subr.bf16.mxu0 0
  %518 = vmatpush1.bf16.msra.mxu0 0
  %519 = vmatprep.subr.bf16.mxu0 0
  %520 = vmatpush1.bf16.msra.mxu0 0
  %521 = vmatprep.subr.bf16.mxu0 0
  %522 = vmatpush1.bf16.msra.mxu0 0
  %523 = vmatprep.subr.bf16.mxu0 0
  %524 = vmatpush1.bf16.msra.mxu0 0
  %525 = vmatprep.subr.bf16.mxu0 0
  %526 = vmatpush1.bf16.msra.mxu0 0
  %527 = vmatprep.subr.bf16.mxu0 0
  %528 = vmatpush1.bf16.msra.mxu0 0
  %529 = vmatprep.mubr.bf16.mxu0 0
  %530 = vmatmul.mubr.bf16.gmra.mrb[0].mxu0 %v488
  %v531 = vpop.f32.mrb[0].mxu0
  %v532 = vadd.f32 0.0, %v531
  %v533 = vpop.f32.mrb[0].mxu0
  %v534 = vpop.f32.mrb[0].mxu0
  %v535 = vpop.f32.mrb[0].mxu0
  %536 = vdwg.mxu0
  %v537 = vmul.f32 %v480, %v532
  %v538 = vpack.c.bf16 %v537, %v537
  %v541 = vunpack.c.l.b16 %v39
  %v542 = vunpack.c.l.b16 %v40
  %v543 = vpack.c.b16 %v542, %v541
  %vm545 = vcmask 130048
  %v547 = vsel %vm545, %v538, 0
  %549 = vmatprep.subr.bf16.mxu0 0
  %550 = vmatpush1.bf16.msra.mxu0 %v543
  %551 = vmatprep.subr.bf16.mxu0 0
  %552 = vmatpush1.bf16.msra.mxu0 0
  %553 = vmatprep.subr.bf16.mxu0 0
  %554 = vmatpush1.bf16.msra.mxu0 0
  %555 = vmatprep.subr.bf16.mxu0 0
  %556 = vmatpush1.bf16.msra.mxu0 0
  %557 = vmatprep.subr.bf16.mxu0 0
  %558 = vmatpush1.bf16.msra.mxu0 0
  %559 = vmatprep.subr.bf16.mxu0 0
  %560 = vmatpush1.bf16.msra.mxu0 0
  %561 = vmatprep.subr.bf16.mxu0 0
  %562 = vmatpush1.bf16.msra.mxu0 0
  %563 = vmatprep.subr.bf16.mxu0 0
  %564 = vmatpush1.bf16.msra.mxu0 0
  %565 = vmatprep.subr.bf16.mxu0 0
  %566 = vmatpush1.bf16.msra.mxu0 0
  %567 = vmatprep.subr.bf16.mxu0 0
  %568 = vmatpush1.bf16.msra.mxu0 0
  %569 = vmatprep.subr.bf16.mxu0 0
  %570 = vmatpush1.bf16.msra.mxu0 0
  %571 = vmatprep.subr.bf16.mxu0 0
  %572 = vmatpush1.bf16.msra.mxu0 0
  %573 = vmatprep.subr.bf16.mxu0 0
  %574 = vmatpush1.bf16.msra.mxu0 0
  %575 = vmatprep.subr.bf16.mxu0 0
  %576 = vmatpush1.bf16.msra.mxu0 0
  %577 = vmatprep.subr.bf16.mxu0 0
  %578 = vmatpush1.bf16.msra.mxu0 0
  %579 = vmatprep.subr.bf16.mxu0 0
  %580 = vmatpush1.bf16.msra.mxu0 0
  %581 = vmatprep.mubr.bf16.mxu0 0
  %582 = vmatmul.mubr.bf16.gmra.mrb[0].mxu0 %v547
  %v583 = vpop.f32.mrb[0].mxu0
  %v584 = vadd.f32 0.0, %v583
  %v585 = vpop.f32.mrb[0].mxu0
  %v586 = vpop.f32.mrb[0].mxu0
  %v587 = vpop.f32.mrb[0].mxu0
  %588 = vdwg.mxu0
  %v589 = vadd.f32 %v480, %v584
  %590 = vst.msk [vmem:[%s3] sm:$0xff] %vm545, %v589
  // Predicated region
  $region14: #{finetune_forward.1} parent=0 // pred_check
    _
  $region15: #{finetune_forward.1} parent=0 // pred_check_branch
    %592 = sbr.rel (0) target = $region17
  $region16: #{finetune_forward.1} parent=0 // pred_region
    _
  $region17: #{finetune_forward.1} parent=0 // pred_fallthru
    _
  // Predicated region
  $region18: #{finetune_forward.1} parent=0 // pred_check
    _
  $region19: #{finetune_forward.1} parent=0 // pred_check_branch
    %594 = sbr.rel (0) target = $region21
  $region20: #{finetune_forward.1} parent=0 // pred_region
    _
  $region21: #{finetune_forward.1} parent=0 // pred_fallthru
    _

</llo_original>
